<compile_context>
chip_gen: v5e
topology: v5e:2x2
jax: 0.10.0
libtpu: 0.0.40
codegen_flags: <defaults>
</compile_context>

<pallas_src>
import functools

import jax
import jax.numpy as jnp
from jax.experimental import pallas as pl
from jax.experimental.pallas import tpu as pltpu


def _tensorcores_per_chip():
    """Best-effort TensorCore count per chip (used only for grid sizing, never results)."""
    try:
        kind = jax.devices()[0].device_kind.lower()
    except Exception:
        return 2
    if any(tag in kind for tag in ("v5 lite", "v5e", "v6 lite", "v6e", "v6")):
        return 1  # single-TensorCore chips
    return 2      # v2/v3/v4/v5p/v7x (and unknown): assume 2 cores, keep both busy


def _dwconv_block_kernel(x_ref, colid_ref, wdw_ref, b1_ref, wpw_ref, b2_ref,
                         o_ref, xpad_ref, *, NB, H, W, K, C1, C2, F):
    # x_ref    : (NB, C1, H*W)     channel-major flat activation tile
    # colid_ref: (1, 1, H*W)       int32 per-pixel column index j = p mod W
    # wdw_ref  : (K*K, C1, 1)      depthwise taps, tap-major, BN1 scale folded, f32
    # b1_ref   : (C1, 1)           folded BN1 bias, f32
    # wpw_ref  : (C1, C2, 1)       pointwise weights, BN2 scale folded, f32
    # b2_ref   : (C2, 1)           folded BN2 bias, f32
    # o_ref    : (NB, C2, H*W)
    # xpad_ref : (NB, C1, F+H*W+F) flat scratch with 128-lane zero margins on both sides
    HW = H * W
    PAD = K // 2

    # Zero the (tiny) flat scratch, then drop the activation tile in with a single
    # lane-aligned (F is a multiple of 128), unmasked, HW-lane-wide store.
    xpad_ref[...] = jnp.zeros_like(xpad_ref)
    xpad_ref[:, :, F:F + HW] = x_ref[...].astype(jnp.float32)

    col = colid_ref[...]          # (1, 1, HW) int32
    wdw = wdw_ref[...]            # (K*K, C1, 1), loaded once
    wpw = wpw_ref[...]            # (C1, C2, 1), loaded once

    # Depthwise KxK conv (stride 1, dilation 1): each tap is a constant-offset lane slice
    # of the flat scratch.  Row over/under-runs land in the zero margins; column wrap of
    # the flat (row-major, unpadded-width) layout is masked via `col`.
    acc = jnp.zeros((NB, C1, HW), jnp.float32)
    for ki in range(K):
        dr = ki - PAD
        for kj in range(K):
            dc = kj - PAD
            s = F + dr * W + dc
            xs = xpad_ref[:, :, s:s + HW]                       # (NB, C1, HW)
            if dc < 0:
                xs = jnp.where(col >= -dc, xs, 0.0)
            elif dc > 0:
                xs = jnp.where(col < W - dc, xs, 0.0)
            acc = acc + xs * wdw[ki * K + kj]                   # (C1, 1) lane-broadcast tap

    # BN1 bias (scale already folded into the taps) + ReLU.
    y1 = jnp.maximum(acc + b1_ref[...], 0.0)                    # (NB, C1, HW)

    # 1x1 pointwise conv: C1 unrolled VPU FMAs into a lane-dense (C2, HW) accumulator.
    y2 = jnp.zeros((NB, C2, HW), jnp.float32)
    for c1 in range(C1):
        y2 = y2 + y1[:, c1:c1 + 1, :] * wpw[c1]                 # (NB,1,HW) * (C2,1)

    # BN2 bias + ReLU; lane-dense (HW-wide) unmasked store.
    o_ref[...] = jnp.maximum(y2 + b2_ref[...], 0.0).astype(o_ref.dtype)


def dwconv_block(x_nchw, w_dw, bn1, w_pw, bn2, *, k=3, eps=1e-5):
    """DWConvBlock forward (eval-mode BN), NCHW activations (PyTorch layout = fast path).

    x_nchw : (N, C1, H, W)
    w_dw   : (C1, 1, k, k)   depthwise conv weight (PyTorch layout)
    bn1    : (gamma, beta, mean, var), each (C1,)
    w_pw   : (C2, C1, 1, 1)  pointwise conv weight (PyTorch layout)
    bn2    : (gamma, beta, mean, var), each (C2,)
    returns (N, C2, H, W)
    """
    N, C1, H, W = x_nchw.shape
    C2 = w_pw.shape[0]
    assert k % 2 == 1, "in-kernel 'same' padding assumes odd k"
    pad = k // 2
    HW = H * W

    def fold_bn(params):
        gamma, beta, mean, var = params
        scale = (gamma / jnp.sqrt(var + eps)).astype(jnp.float32)
        bias = (beta - mean * scale).astype(jnp.float32)
        return scale, bias

    s1, b1 = fold_bn(bn1)
    s2, b2 = fold_bn(bn2)

    # Depthwise weights (C1,1,k,k) -> (k*k, C1, 1), tap-major, BN1 scale folded in.
    wdw = (jnp.transpose(w_dw[:, 0, :, :], (1, 2, 0)).reshape(k * k, C1)
           .astype(jnp.float32) * s1[None, :])[..., None]
    # Pointwise weights (C2,C1,1,1) -> (C1, C2, 1), BN2 scale folded into output channels.
    wpw = jnp.transpose(w_pw[:, :, 0, 0].astype(jnp.float32) * s2[:, None], (1, 0))[..., None]

    # Per-pixel column index (j = p mod W) for masking the W-direction taps.
    colid = (jnp.arange(HW, dtype=jnp.int32) % W).reshape(1, 1, HW)

    # Channel-major flat layout: channels on sublanes, H*W pixels lane-dense (free reshape).
    x_flat = x_nchw.reshape(N, C1, HW)

    # One grid step on single-TensorCore chips; two parallel steps on 2-TC chips.
    n_tc = _tensorcores_per_chip()
    nb_blocks = n_tc if (n_tc > 1 and N >= n_tc and N % n_tc == 0) else 1
    NB = N // nb_blocks

    # Flat scratch with 128-lane zero margins so the interior write at [F, F+HW) is
    # lane-aligned and the tap slices' row over/under-runs read zeros.
    F = ((pad * W + pad + 127) // 128) * 128
    L = F + HW + F

    kernel = functools.partial(_dwconv_block_kernel, NB=NB, H=H, W=W, K=k,
                               C1=C1, C2=C2, F=F)

    out_flat = pl.pallas_call(
        kernel,
        out_shape=jax.ShapeDtypeStruct((N, C2, HW), x_nchw.dtype),
        grid_spec=pltpu.PrefetchScalarGridSpec(
            num_scalar_prefetch=0,
            grid=(nb_blocks,),
            in_specs=[
                pl.BlockSpec((NB, C1, HW), lambda n: (n, 0, 0)),
                pl.BlockSpec((1, 1, HW), lambda n: (0, 0, 0)),
                pl.BlockSpec((k * k, C1, 1), lambda n: (0, 0, 0)),
                pl.BlockSpec((C1, 1), lambda n: (0, 0)),
                pl.BlockSpec((C1, C2, 1), lambda n: (0, 0, 0)),
                pl.BlockSpec((C2, 1), lambda n: (0, 0)),
            ],
            out_specs=pl.BlockSpec((NB, C2, HW), lambda n: (n, 0, 0)),
            scratch_shapes=[pltpu.VMEM((NB, C1, L), jnp.float32)],
        ),
        compiler_params=pltpu.CompilerParams(
            dimension_semantics=("parallel",),
            vmem_limit_bytes=4 * 1024 * 1024,   # actual working set is < 100 KiB
        ),
    )(x_flat, colid, wdw, b1.reshape(C1, 1), wpw, b2.reshape(C2, 1))

    return out_flat.reshape(N, C2, H, W)


def _reference(x_nchw, w_dw, bn1, w_pw, bn2, *, k=3):
    """Pure-JAX reference (lax conv, NCHW) for correctness checking."""
    eps = 1e-5
    C1 = x_nchw.shape[1]
    pad = k // 2

    y = jax.lax.conv_general_dilated(
        x_nchw.astype(jnp.float32), w_dw.astype(jnp.float32),
        window_strides=(1, 1), padding=[(pad, pad), (pad, pad)],
        dimension_numbers=("NCHW", "OIHW", "NCHW"),
        feature_group_count=C1)
    g, b, m, v = bn1
    y = (y - m[None, :, None, None]) / jnp.sqrt(v + eps)[None, :, None, None]
    y = y * g[None, :, None, None] + b[None, :, None, None]
    y = jnp.maximum(y, 0.0)

    y = jax.lax.conv_general_dilated(
        y, w_pw.astype(jnp.float32),
        window_strides=(1, 1), padding=[(0, 0), (0, 0)],
        dimension_numbers=("NCHW", "OIHW", "NCHW"))
    g, b, m, v = bn2
    y = (y - m[None, :, None, None]) / jnp.sqrt(v + eps)[None, :, None, None]
    y = y * g[None, :, None, None] + b[None, :, None, None]
    y = jnp.maximum(y, 0.0)
    return y.astype(x_nchw.dtype)


if __name__ == "__main__":
    N, C1, C2, H, W, K = 2, 4, 8, 16, 16, 3

    key = jax.random.PRNGKey(0)
    (kx, kdw, kpw,
     kg1, kb1, km1, kv1,
     kg2, kb2, km2, kv2) = jax.random.split(key, 11)

    x = jax.random.normal(kx, (N, C1, H, W), jnp.float32)

    # conv weights (PyTorch layouts), deterministic init
    w_dw = jax.random.normal(kdw, (C1, 1, K, K), jnp.float32) * 0.3
    w_pw = jax.random.normal(kpw, (C2, C1, 1, 1), jnp.float32) * 0.3

    # BatchNorm params (eval mode): gamma, beta, running_mean, running_var
    bn1 = (1.0 + 0.1 * jax.random.normal(kg1, (C1,), jnp.float32),
           0.1 * jax.random.normal(kb1, (C1,), jnp.float32),
           0.05 * jax.random.normal(km1, (C1,), jnp.float32),
           jnp.abs(1.0 + 0.1 * jax.random.normal(kv1, (C1,), jnp.float32)))
    bn2 = (1.0 + 0.1 * jax.random.normal(kg2, (C2,), jnp.float32),
           0.1 * jax.random.normal(kb2, (C2,), jnp.float32),
           0.05 * jax.random.normal(km2, (C2,), jnp.float32),
           jnp.abs(1.0 + 0.1 * jax.random.normal(kv2, (C2,), jnp.float32)))

    ref = jax.block_until_ready(_reference(x, w_dw, bn1, w_pw, bn2, k=K))
    out = jax.block_until_ready(dwconv_block(x, w_dw, bn1, w_pw, bn2, k=K))

    assert out.shape == (N, C2, H, W)
    err = float(jnp.max(jnp.abs(out - ref)))
    assert jnp.allclose(out, ref, atol=1e-4, rtol=1e-4), err

    print("KERNEL_OK")
</pallas_src>

<mosaic_0001>
module attributes {stable_mosaic.version = 11 : i64} {
  func.func @_dwconv_block_kernel(%arg0: i32, %arg1: memref<1x4x256xf32, #tpu.memory_space<vmem>>, %arg2: memref<1x1x256xi32, #tpu.memory_space<vmem>>, %arg3: memref<9x4x1xf32, #tpu.memory_space<vmem>>, %arg4: memref<4x1xf32, #tpu.memory_space<vmem>>, %arg5: memref<4x8x1xf32, #tpu.memory_space<vmem>>, %arg6: memref<8x1xf32, #tpu.memory_space<vmem>>, %arg7: memref<1x8x256xf32, #tpu.memory_space<vmem>>, %arg8: memref<1x4x512xf32, #tpu.memory_space<vmem>>) attributes {dimension_semantics = [#tpu.dimension_semantics<parallel>], iteration_bounds = array<i64: 2>, scalar_prefetch = 0 : i64, scratch_operands = 1 : i64, tpu.core_type = #tpu.core_type<tc>, window_params = [{transform_indices = @transform_0, window_bounds = array<i64: 1, 4, 256>}, {pipeline_mode = #tpu.pipeline_mode<synchronous>, transform_indices = @transform_1, window_bounds = array<i64: 1, 1, 256>}, {pipeline_mode = #tpu.pipeline_mode<synchronous>, transform_indices = @transform_2, window_bounds = array<i64: 9, 4, 1>}, {pipeline_mode = #tpu.pipeline_mode<synchronous>, transform_indices = @transform_3, window_bounds = array<i64: 4, 1>}, {pipeline_mode = #tpu.pipeline_mode<synchronous>, transform_indices = @transform_4, window_bounds = array<i64: 4, 8, 1>}, {pipeline_mode = #tpu.pipeline_mode<synchronous>, transform_indices = @transform_5, window_bounds = array<i64: 8, 1>}, {transform_indices = @transform_6, window_bounds = array<i64: 1, 8, 256>}]} {
    %cst = arith.constant 0.000000e+00 : f32
    %0 = vector.broadcast %cst : f32 to vector<1x4x512xf32>
    %c0 = arith.constant 0 : index
    %c0_0 = arith.constant 0 : index
    %c0_1 = arith.constant 0 : index
    %1 = vector.load %arg8[%c0, %c0_0, %c0_1] : memref<1x4x512xf32, #tpu.memory_space<vmem>>, vector<1x4x512xf32>
    tpu.vector_store %arg8[%c0, %c0_0, %c0_1], %0 {strides = array<i32>} : memref<1x4x512xf32, #tpu.memory_space<vmem>>, vector<1x4x512xf32>,
    %c0_2 = arith.constant 0 : index
    %c0_3 = arith.constant 0 : index
    %c0_4 = arith.constant 0 : index
    %2 = vector.load %arg1[%c0_2, %c0_3, %c0_4] : memref<1x4x256xf32, #tpu.memory_space<vmem>>, vector<1x4x256xf32>
    %c0_5 = arith.constant 0 : index
    %c0_6 = arith.constant 0 : index
    %c128 = arith.constant 128 : index
    %3 = vector.load %arg8[%c0_5, %c0_6, %c128] : memref<1x4x512xf32, #tpu.memory_space<vmem>>, vector<1x4x256xf32>
    tpu.vector_store %arg8[%c0_5, %c0_6, %c128], %2 {strides = array<i32>} : memref<1x4x512xf32, #tpu.memory_space<vmem>>, vector<1x4x256xf32>,
    %c0_7 = arith.constant 0 : index
    %c0_8 = arith.constant 0 : index
    %c0_9 = arith.constant 0 : index
    %4 = vector.load %arg2[%c0_7, %c0_8, %c0_9] : memref<1x1x256xi32, #tpu.memory_space<vmem>>, vector<1x1x256xi32>
    %c0_10 = arith.constant 0 : index
    %c0_11 = arith.constant 0 : index
    %c0_12 = arith.constant 0 : index
    %5 = vector.load %arg3[%c0_10, %c0_11, %c0_12] : memref<9x4x1xf32, #tpu.memory_space<vmem>>, vector<9x4x1xf32>
    %c0_13 = arith.constant 0 : index
    %c0_14 = arith.constant 0 : index
    %c0_15 = arith.constant 0 : index
    %6 = vector.load %arg5[%c0_13, %c0_14, %c0_15] : memref<4x8x1xf32, #tpu.memory_space<vmem>>, vector<4x8x1xf32>
    %cst_16 = arith.constant 0.000000e+00 : f32
    %7 = vector.broadcast %cst_16 : f32 to vector<1x4x256xf32>
    %c0_17 = arith.constant 0 : index
    %c0_18 = arith.constant 0 : index
    %c111 = arith.constant 111 : index
    %8 = vector.load %arg8[%c0_17, %c0_18, %c111] : memref<1x4x512xf32, #tpu.memory_space<vmem>>, vector<1x4x256xf32>
    %c1_i32 = arith.constant 1 : i32
    %9 = vector.broadcast %c1_i32 : i32 to vector<1x1x256xi32>
    %10 = arith.cmpi sge, %4, %9 : vector<1x1x256xi32>
    %cst_19 = arith.constant 0.000000e+00 : f32
    %11 = vector.shape_cast %10 : vector<1x1x256xi1> to vector<1x1x256xi1>
    %12 = vector.broadcast %11 : vector<1x1x256xi1> to vector<1x4x256xi1>
    %13 = vector.broadcast %cst_19 : f32 to vector<1x4x256xf32>
    %14 = arith.select %12, %8, %13 : vector<1x4x256xi1>, vector<1x4x256xf32>
    %15 = vector.extract_strided_slice %5 {offsets = [0, 0, 0], sizes = [1, 4, 1], strides = [1, 1, 1]} : vector<9x4x1xf32> to vector<1x4x1xf32>
    %16 = vector.shape_cast %15 : vector<1x4x1xf32> to vector<4x1xf32>
    %17 = vector.shape_cast %16 : vector<4x1xf32> to vector<1x4x1xf32>
    %18 = vector.broadcast %17 : vector<1x4x1xf32> to vector<1x4x256xf32>
    %19 = arith.mulf %14, %18 : vector<1x4x256xf32>
    %20 = arith.addf %7, %19 : vector<1x4x256xf32>
    %c0_20 = arith.constant 0 : index
    %c0_21 = arith.constant 0 : index
    %c112 = arith.constant 112 : index
    %21 = vector.load %arg8[%c0_20, %c0_21, %c112] : memref<1x4x512xf32, #tpu.memory_space<vmem>>, vector<1x4x256xf32>
    %22 = vector.extract_strided_slice %5 {offsets = [1, 0, 0], sizes = [1, 4, 1], strides = [1, 1, 1]} : vector<9x4x1xf32> to vector<1x4x1xf32>
    %23 = vector.shape_cast %22 : vector<1x4x1xf32> to vector<4x1xf32>
    %24 = vector.shape_cast %23 : vector<4x1xf32> to vector<1x4x1xf32>
    %25 = vector.broadcast %24 : vector<1x4x1xf32> to vector<1x4x256xf32>
    %26 = arith.mulf %21, %25 : vector<1x4x256xf32>
    %27 = arith.addf %20, %26 : vector<1x4x256xf32>
    %c0_22 = arith.constant 0 : index
    %c0_23 = arith.constant 0 : index
    %c113 = arith.constant 113 : index
    %28 = vector.load %arg8[%c0_22, %c0_23, %c113] : memref<1x4x512xf32, #tpu.memory_space<vmem>>, vector<1x4x256xf32>
    %c15_i32 = arith.constant 15 : i32
    %29 = vector.broadcast %c15_i32 : i32 to vector<1x1x256xi32>
    %30 = arith.cmpi slt, %4, %29 : vector<1x1x256xi32>
    %cst_24 = arith.constant 0.000000e+00 : f32
    %31 = vector.shape_cast %30 : vector<1x1x256xi1> to vector<1x1x256xi1>
    %32 = vector.broadcast %31 : vector<1x1x256xi1> to vector<1x4x256xi1>
    %33 = vector.broadcast %cst_24 : f32 to vector<1x4x256xf32>
    %34 = arith.select %32, %28, %33 : vector<1x4x256xi1>, vector<1x4x256xf32>
    %35 = vector.extract_strided_slice %5 {offsets = [2, 0, 0], sizes = [1, 4, 1], strides = [1, 1, 1]} : vector<9x4x1xf32> to vector<1x4x1xf32>
    %36 = vector.shape_cast %35 : vector<1x4x1xf32> to vector<4x1xf32>
    %37 = vector.shape_cast %36 : vector<4x1xf32> to vector<1x4x1xf32>
    %38 = vector.broadcast %37 : vector<1x4x1xf32> to vector<1x4x256xf32>
    %39 = arith.mulf %34, %38 : vector<1x4x256xf32>
    %40 = arith.addf %27, %39 : vector<1x4x256xf32>
    %c0_25 = arith.constant 0 : index
    %c0_26 = arith.constant 0 : index
    %c127 = arith.constant 127 : index
    %41 = vector.load %arg8[%c0_25, %c0_26, %c127] : memref<1x4x512xf32, #tpu.memory_space<vmem>>, vector<1x4x256xf32>
    %c1_i32_27 = arith.constant 1 : i32
    %42 = vector.broadcast %c1_i32_27 : i32 to vector<1x1x256xi32>
    %43 = arith.cmpi sge, %4, %42 : vector<1x1x256xi32>
    %cst_28 = arith.constant 0.000000e+00 : f32
    %44 = vector.shape_cast %43 : vector<1x1x256xi1> to vector<1x1x256xi1>
    %45 = vector.broadcast %44 : vector<1x1x256xi1> to vector<1x4x256xi1>
    %46 = vector.broadcast %cst_28 : f32 to vector<1x4x256xf32>
    %47 = arith.select %45, %41, %46 : vector<1x4x256xi1>, vector<1x4x256xf32>
    %48 = vector.extract_strided_slice %5 {offsets = [3, 0, 0], sizes = [1, 4, 1], strides = [1, 1, 1]} : vector<9x4x1xf32> to vector<1x4x1xf32>
    %49 = vector.shape_cast %48 : vector<1x4x1xf32> to vector<4x1xf32>
    %50 = vector.shape_cast %49 : vector<4x1xf32> to vector<1x4x1xf32>
    %51 = vector.broadcast %50 : vector<1x4x1xf32> to vector<1x4x256xf32>
    %52 = arith.mulf %47, %51 : vector<1x4x256xf32>
    %53 = arith.addf %40, %52 : vector<1x4x256xf32>
    %c0_29 = arith.constant 0 : index
    %c0_30 = arith.constant 0 : index
    %c128_31 = arith.constant 128 : index
    %54 = vector.load %arg8[%c0_29, %c0_30, %c128_31] : memref<1x4x512xf32, #tpu.memory_space<vmem>>, vector<1x4x256xf32>
    %55 = vector.extract_strided_slice %5 {offsets = [4, 0, 0], sizes = [1, 4, 1], strides = [1, 1, 1]} : vector<9x4x1xf32> to vector<1x4x1xf32>
    %56 = vector.shape_cast %55 : vector<1x4x1xf32> to vector<4x1xf32>
    %57 = vector.shape_cast %56 : vector<4x1xf32> to vector<1x4x1xf32>
    %58 = vector.broadcast %57 : vector<1x4x1xf32> to vector<1x4x256xf32>
    %59 = arith.mulf %54, %58 : vector<1x4x256xf32>
    %60 = arith.addf %53, %59 : vector<1x4x256xf32>
    %c0_32 = arith.constant 0 : index
    %c0_33 = arith.constant 0 : index
    %c129 = arith.constant 129 : index
    %61 = vector.load %arg8[%c0_32, %c0_33, %c129] : memref<1x4x512xf32, #tpu.memory_space<vmem>>, vector<1x4x256xf32>
    %c15_i32_34 = arith.constant 15 : i32
    %62 = vector.broadcast %c15_i32_34 : i32 to vector<1x1x256xi32>
    %63 = arith.cmpi slt, %4, %62 : vector<1x1x256xi32>
    %cst_35 = arith.constant 0.000000e+00 : f32
    %64 = vector.shape_cast %63 : vector<1x1x256xi1> to vector<1x1x256xi1>
    %65 = vector.broadcast %64 : vector<1x1x256xi1> to vector<1x4x256xi1>
    %66 = vector.broadcast %cst_35 : f32 to vector<1x4x256xf32>
    %67 = arith.select %65, %61, %66 : vector<1x4x256xi1>, vector<1x4x256xf32>
    %68 = vector.extract_strided_slice %5 {offsets = [5, 0, 0], sizes = [1, 4, 1], strides = [1, 1, 1]} : vector<9x4x1xf32> to vector<1x4x1xf32>
    %69 = vector.shape_cast %68 : vector<1x4x1xf32> to vector<4x1xf32>
    %70 = vector.shape_cast %69 : vector<4x1xf32> to vector<1x4x1xf32>
    %71 = vector.broadcast %70 : vector<1x4x1xf32> to vector<1x4x256xf32>
    %72 = arith.mulf %67, %71 : vector<1x4x256xf32>
    %73 = arith.addf %60, %72 : vector<1x4x256xf32>
    %c0_36 = arith.constant 0 : index
    %c0_37 = arith.constant 0 : index
    %c143 = arith.constant 143 : index
    %74 = vector.load %arg8[%c0_36, %c0_37, %c143] : memref<1x4x512xf32, #tpu.memory_space<vmem>>, vector<1x4x256xf32>
    %c1_i32_38 = arith.constant 1 : i32
    %75 = vector.broadcast %c1_i32_38 : i32 to vector<1x1x256xi32>
    %76 = arith.cmpi sge, %4, %75 : vector<1x1x256xi32>
    %cst_39 = arith.constant 0.000000e+00 : f32
    %77 = vector.shape_cast %76 : vector<1x1x256xi1> to vector<1x1x256xi1>
    %78 = vector.broadcast %77 : vector<1x1x256xi1> to vector<1x4x256xi1>
    %79 = vector.broadcast %cst_39 : f32 to vector<1x4x256xf32>
    %80 = arith.select %78, %74, %79 : vector<1x4x256xi1>, vector<1x4x256xf32>
    %81 = vector.extract_strided_slice %5 {offsets = [6, 0, 0], sizes = [1, 4, 1], strides = [1, 1, 1]} : vector<9x4x1xf32> to vector<1x4x1xf32>
    %82 = vector.shape_cast %81 : vector<1x4x1xf32> to vector<4x1xf32>
    %83 = vector.shape_cast %82 : vector<4x1xf32> to vector<1x4x1xf32>
    %84 = vector.broadcast %83 : vector<1x4x1xf32> to vector<1x4x256xf32>
    %85 = arith.mulf %80, %84 : vector<1x4x256xf32>
    %86 = arith.addf %73, %85 : vector<1x4x256xf32>
    %c0_40 = arith.constant 0 : index
    %c0_41 = arith.constant 0 : index
    %c144 = arith.constant 144 : index
    %87 = vector.load %arg8[%c0_40, %c0_41, %c144] : memref<1x4x512xf32, #tpu.memory_space<vmem>>, vector<1x4x256xf32>
    %88 = vector.extract_strided_slice %5 {offsets = [7, 0, 0], sizes = [1, 4, 1], strides = [1, 1, 1]} : vector<9x4x1xf32> to vector<1x4x1xf32>
    %89 = vector.shape_cast %88 : vector<1x4x1xf32> to vector<4x1xf32>
    %90 = vector.shape_cast %89 : vector<4x1xf32> to vector<1x4x1xf32>
    %91 = vector.broadcast %90 : vector<1x4x1xf32> to vector<1x4x256xf32>
    %92 = arith.mulf %87, %91 : vector<1x4x256xf32>
    %93 = arith.addf %86, %92 : vector<1x4x256xf32>
    %c0_42 = arith.constant 0 : index
    %c0_43 = arith.constant 0 : index
    %c145 = arith.constant 145 : index
    %94 = vector.load %arg8[%c0_42, %c0_43, %c145] : memref<1x4x512xf32, #tpu.memory_space<vmem>>, vector<1x4x256xf32>
    %c15_i32_44 = arith.constant 15 : i32
    %95 = vector.broadcast %c15_i32_44 : i32 to vector<1x1x256xi32>
    %96 = arith.cmpi slt, %4, %95 : vector<1x1x256xi32>
    %cst_45 = arith.constant 0.000000e+00 : f32
    %97 = vector.shape_cast %96 : vector<1x1x256xi1> to vector<1x1x256xi1>
    %98 = vector.broadcast %97 : vector<1x1x256xi1> to vector<1x4x256xi1>
    %99 = vector.broadcast %cst_45 : f32 to vector<1x4x256xf32>
    %100 = arith.select %98, %94, %99 : vector<1x4x256xi1>, vector<1x4x256xf32>
    %101 = vector.extract_strided_slice %5 {offsets = [8, 0, 0], sizes = [1, 4, 1], strides = [1, 1, 1]} : vector<9x4x1xf32> to vector<1x4x1xf32>
    %102 = vector.shape_cast %101 : vector<1x4x1xf32> to vector<4x1xf32>
    %103 = vector.shape_cast %102 : vector<4x1xf32> to vector<1x4x1xf32>
    %104 = vector.broadcast %103 : vector<1x4x1xf32> to vector<1x4x256xf32>
    %105 = arith.mulf %100, %104 : vector<1x4x256xf32>
    %106 = arith.addf %93, %105 : vector<1x4x256xf32>
    %c0_46 = arith.constant 0 : index
    %c0_47 = arith.constant 0 : index
    %107 = vector.load %arg4[%c0_46, %c0_47] : memref<4x1xf32, #tpu.memory_space<vmem>>, vector<4x1xf32>
    %108 = vector.shape_cast %107 : vector<4x1xf32> to vector<1x4x1xf32>
    %109 = vector.broadcast %108 : vector<1x4x1xf32> to vector<1x4x256xf32>
    %110 = arith.addf %106, %109 : vector<1x4x256xf32>
    %cst_48 = arith.constant 0.000000e+00 : f32
    %111 = vector.broadcast %cst_48 : f32 to vector<1x4x256xf32>
    %112 = arith.maximumf %110, %111 : vector<1x4x256xf32>
    %cst_49 = arith.constant 0.000000e+00 : f32
    %113 = vector.broadcast %cst_49 : f32 to vector<1x8x256xf32>
    %114 = vector.extract_strided_slice %112 {offsets = [0, 0, 0], sizes = [1, 1, 256], strides = [1, 1, 1]} : vector<1x4x256xf32> to vector<1x1x256xf32>
    %115 = vector.extract_strided_slice %6 {offsets = [0, 0, 0], sizes = [1, 8, 1], strides = [1, 1, 1]} : vector<4x8x1xf32> to vector<1x8x1xf32>
    %116 = vector.shape_cast %115 : vector<1x8x1xf32> to vector<8x1xf32>
    %117 = vector.shape_cast %116 : vector<8x1xf32> to vector<1x8x1xf32>
    %118 = vector.broadcast %114 : vector<1x1x256xf32> to vector<1x8x256xf32>
    %119 = vector.broadcast %117 : vector<1x8x1xf32> to vector<1x8x256xf32>
    %120 = arith.mulf %118, %119 : vector<1x8x256xf32>
    %121 = arith.addf %113, %120 : vector<1x8x256xf32>
    %122 = vector.extract_strided_slice %112 {offsets = [0, 1, 0], sizes = [1, 1, 256], strides = [1, 1, 1]} : vector<1x4x256xf32> to vector<1x1x256xf32>
    %123 = vector.extract_strided_slice %6 {offsets = [1, 0, 0], sizes = [1, 8, 1], strides = [1, 1, 1]} : vector<4x8x1xf32> to vector<1x8x1xf32>
    %124 = vector.shape_cast %123 : vector<1x8x1xf32> to vector<8x1xf32>
    %125 = vector.shape_cast %124 : vector<8x1xf32> to vector<1x8x1xf32>
    %126 = vector.broadcast %122 : vector<1x1x256xf32> to vector<1x8x256xf32>
    %127 = vector.broadcast %125 : vector<1x8x1xf32> to vector<1x8x256xf32>
    %128 = arith.mulf %126, %127 : vector<1x8x256xf32>
    %129 = arith.addf %121, %128 : vector<1x8x256xf32>
    %130 = vector.extract_strided_slice %112 {offsets = [0, 2, 0], sizes = [1, 1, 256], strides = [1, 1, 1]} : vector<1x4x256xf32> to vector<1x1x256xf32>
    %131 = vector.extract_strided_slice %6 {offsets = [2, 0, 0], sizes = [1, 8, 1], strides = [1, 1, 1]} : vector<4x8x1xf32> to vector<1x8x1xf32>
    %132 = vector.shape_cast %131 : vector<1x8x1xf32> to vector<8x1xf32>
    %133 = vector.shape_cast %132 : vector<8x1xf32> to vector<1x8x1xf32>
    %134 = vector.broadcast %130 : vector<1x1x256xf32> to vector<1x8x256xf32>
    %135 = vector.broadcast %133 : vector<1x8x1xf32> to vector<1x8x256xf32>
    %136 = arith.mulf %134, %135 : vector<1x8x256xf32>
    %137 = arith.addf %129, %136 : vector<1x8x256xf32>
    %138 = vector.extract_strided_slice %112 {offsets = [0, 3, 0], sizes = [1, 1, 256], strides = [1, 1, 1]} : vector<1x4x256xf32> to vector<1x1x256xf32>
    %139 = vector.extract_strided_slice %6 {offsets = [3, 0, 0], sizes = [1, 8, 1], strides = [1, 1, 1]} : vector<4x8x1xf32> to vector<1x8x1xf32>
    %140 = vector.shape_cast %139 : vector<1x8x1xf32> to vector<8x1xf32>
    %141 = vector.shape_cast %140 : vector<8x1xf32> to vector<1x8x1xf32>
    %142 = vector.broadcast %138 : vector<1x1x256xf32> to vector<1x8x256xf32>
    %143 = vector.broadcast %141 : vector<1x8x1xf32> to vector<1x8x256xf32>
    %144 = arith.mulf %142, %143 : vector<1x8x256xf32>
    %145 = arith.addf %137, %144 : vector<1x8x256xf32>
    %c0_50 = arith.constant 0 : index
    %c0_51 = arith.constant 0 : index
    %146 = vector.load %arg6[%c0_50, %c0_51] : memref<8x1xf32, #tpu.memory_space<vmem>>, vector<8x1xf32>
    %147 = vector.shape_cast %146 : vector<8x1xf32> to vector<1x8x1xf32>
    %148 = vector.broadcast %147 : vector<1x8x1xf32> to vector<1x8x256xf32>
    %149 = arith.addf %145, %148 : vector<1x8x256xf32>
    %cst_52 = arith.constant 0.000000e+00 : f32
    %150 = vector.broadcast %cst_52 : f32 to vector<1x8x256xf32>
    %151 = arith.maximumf %149, %150 : vector<1x8x256xf32>
    %c0_53 = arith.constant 0 : index
    %c0_54 = arith.constant 0 : index
    %c0_55 = arith.constant 0 : index
    %152 = vector.load %arg7[%c0_53, %c0_54, %c0_55] : memref<1x8x256xf32, #tpu.memory_space<vmem>>, vector<1x8x256xf32>
    tpu.vector_store %arg7[%c0_53, %c0_54, %c0_55], %151 {strides = array<i32>} : memref<1x8x256xf32, #tpu.memory_space<vmem>>, vector<1x8x256xf32>,
    return
  }
  func.func @transform_0(%arg0: i32) -> (i32, i32, i32) {
    %c0_i32 = arith.constant 0 : i32
    %c0_i32_0 = arith.constant 0 : i32
    %c0_i32_1 = arith.constant 0 : i32
    return %arg0, %c0_i32, %c0_i32_0 : i32, i32, i32
  }
  func.func @transform_1(%arg0: i32) -> (i32, i32, i32) {
    %c0_i32 = arith.constant 0 : i32
    %c0_i32_0 = arith.constant 0 : i32
    %c0_i32_1 = arith.constant 0 : i32
    %c0_i32_2 = arith.constant 0 : i32
    return %c0_i32, %c0_i32_0, %c0_i32_1 : i32, i32, i32
  }
  func.func @transform_2(%arg0: i32) -> (i32, i32, i32) {
    %c0_i32 = arith.constant 0 : i32
    %c0_i32_0 = arith.constant 0 : i32
    %c0_i32_1 = arith.constant 0 : i32
    %c0_i32_2 = arith.constant 0 : i32
    return %c0_i32, %c0_i32_0, %c0_i32_1 : i32, i32, i32
  }
  func.func @transform_3(%arg0: i32) -> (i32, i32) {
    %c0_i32 = arith.constant 0 : i32
    %c0_i32_0 = arith.constant 0 : i32
    %c0_i32_1 = arith.constant 0 : i32
    return %c0_i32, %c0_i32_0 : i32, i32
  }
  func.func @transform_4(%arg0: i32) -> (i32, i32, i32) {
    %c0_i32 = arith.constant 0 : i32
    %c0_i32_0 = arith.constant 0 : i32
    %c0_i32_1 = arith.constant 0 : i32
    %c0_i32_2 = arith.constant 0 : i32
    return %c0_i32, %c0_i32_0, %c0_i32_1 : i32, i32, i32
  }
  func.func @transform_5(%arg0: i32) -> (i32, i32) {
    %c0_i32 = arith.constant 0 : i32
    %c0_i32_0 = arith.constant 0 : i32
    %c0_i32_1 = arith.constant 0 : i32
    return %c0_i32, %c0_i32_0 : i32, i32
  }
  func.func @transform_6(%arg0: i32) -> (i32, i32, i32) {
    %c0_i32 = arith.constant 0 : i32
    %c0_i32_0 = arith.constant 0 : i32
    %c0_i32_1 = arith.constant 0 : i32
    return %arg0, %c0_i32, %c0_i32_0 : i32, i32, i32
  }
}

</mosaic_0001>

<llo_original>
// kernel: tpu_custom_call.1
$region0: #{tpu_custom_call.1}
  #allocation0 [shape = 'u32[]', space=smem, size = 0x4, offset = 0x4, fixed_abs, tag = 'smem constant byte address 0x4 - core index']
  #allocation1 [shape = 'u32[72,128]{1,0:T(1,128)}', space=vmem, size = 0x9000, scoped, tag = 'internal scratch']
  #allocation2 [shape = 'f32[1,4,512]{2,1,0:T(4,128)}', space=vmem, size = 0x2000, scoped, tag = 'scratch operand']
  %s0 = inlined_call_operand.vmem [shape: f32[2,4,256], index: 0, kind: input, shape index: {}]
  %s1 = inlined_call_operand.vmem [shape: s32[1,1,256], index: 1, kind: input, shape index: {}]
  %s2 = inlined_call_operand.vmem [shape: f32[9,4,1], index: 2, kind: input, shape index: {}]
  %s3 = inlined_call_operand.vmem [shape: f32[4,1], index: 3, kind: input, shape index: {}]
  %s4 = inlined_call_operand.vmem [shape: f32[4,8,1], index: 4, kind: input, shape index: {}]
  %s5 = inlined_call_operand.vmem [shape: f32[8,1], index: 5, kind: input, shape index: {}]
  %s6 = inlined_call_operand.hbm [shape: f32[2,8,256], index: 6, kind: output, shape index: {}]
  %s7 = sld [smem:[#allocation0]]
  $region57: #{tpu_custom_call.1} parent=0
    _
  %s9 = ssub.s32 1, %s7
  %s10 = scalar_select 0, %s9, %s7
  $region1: #{tpu_custom_call.1} parent=0
    #allocation3 [shape = 'u8[16384]{0}', space=vmem, size = 0x4000, scoped, tag = 'output window, operand 0']
    #allocation4 [shape = 's32[2]{0}', space=sflag, size = 0x8, scoped, tag = 'scoped memory for tpu_custom_call.1']
    %11 = vsyncpa [#allocation4], 0
    %s12 = scalar_lea.sflag [#allocation4], 1
    %13 = vsyncpa %s12, 0
    loop: start=0, step=1, limit=4
    $region2: #{tpu_custom_call.1} parent=1 // loop_pre_header
      _
    $region3: #{tpu_custom_call.1} parent=1 // loop_header
      %s15 = sphi 0, %s19
      %p16 = scmp.ge.s32.totalorder %s15, 4
      %s25 = sphi 0, %s27
      %s28 = sphi 0, %s25
      %s29 = sphi 0, %s28
      %s45 = sphi 0, %s29
      %s49 = sphi 0, %s49
      %s51 = sphi 0, %s49
      %s52 = sphi 0, %s51
      %s66 = sphi 0, %s52
      %s70 = sphi 0, %s70
      %s72 = sphi 0, %s70
      %s73 = sphi 0, %s72
      %s87 = sphi 0, %s73
      %s91 = sphi 0, %s91
      %s93 = sphi 0, %s91
      %s94 = sphi 0, %s93
      %s108 = sphi 0, %s94
      %s112 = sphi 0, %s112
      %s114 = sphi 0, %s112
      %s115 = sphi 0, %s114
      %s129 = sphi 0, %s115
      %s133 = sphi 0, %s133
      %s135 = sphi 0, %s133
      %s136 = sphi 0, %s135
      %s150 = sphi 0, %s136
      %s156 = sphi 0, %s158
      %s159 = sphi 0, %s156
      %s160 = sphi 0, %s159
      %s176 = sphi 0, %s160
    $region4: #{tpu_custom_call.1} parent=1 // loop_header_branch
      %18 = sbr.rel (%p16) target = $region8
    $region5: #{tpu_custom_call.1} parent=1 // loop_body
      %s20 = ssub.s32 %s15, 1
      %s21 = ssub.s32 %s15, 2
      %s22 = sadd.s32 %s15, 1
      %s23 = ssub.s32 %s15, %s22
      %p24 = scmp.eq.s32.totalorder %s23, 0
      %s26 = sadd.s32 %s25, 1
      %s27 = scalar_select %p24, %s25, %s26
      %p30 = pneg %p24
      %p31 = scmp.eq.s32.totalorder %s15, 1
      %p32 = por %p30, %p31
      %p33 = scmp.ne.s32.totalorder %s25, %s28
      %p34 = scmp.eq.s32.totalorder %s15, 0
      %p35 = por %p33, %p34
      %p36 = scmp.ne.s32.totalorder %s25, %s28
      %p37 = scmp.eq.s32.totalorder %s20, 1
      %p38 = por %p36, %p37
      %p39 = scmp.ne.s32.totalorder %s28, %s29
      %p40 = scmp.eq.s32.totalorder %s20, 0
      %p41 = por %p39, %p40
      %p42 = scmp.ne.s32.totalorder %s28, %s29
      %p43 = scmp.eq.s32.totalorder %s21, 1
      %p44 = por %p42, %p43
      %p46 = scmp.ne.s32.totalorder %s29, %s45
      %p47 = scmp.eq.s32.totalorder %s21, 0
      %p48 = por %p46, %p47
      %s50 = sadd.s32 %s49, 1
      %p53 = scmp.eq.s32.totalorder %s15, 1
      %p54 = scmp.ne.s32.totalorder %s49, %s51
      %p55 = scmp.eq.s32.totalorder %s15, 0
      %p56 = por %p54, %p55
      %p57 = scmp.ne.s32.totalorder %s49, %s51
      %p58 = scmp.eq.s32.totalorder %s20, 1
      %p59 = por %p57, %p58
      %p60 = scmp.ne.s32.totalorder %s51, %s52
      %p61 = scmp.eq.s32.totalorder %s20, 0
      %p62 = por %p60, %p61
      %p63 = scmp.ne.s32.totalorder %s51, %s52
      %p64 = scmp.eq.s32.totalorder %s21, 1
      %p65 = por %p63, %p64
      %p67 = scmp.ne.s32.totalorder %s52, %s66
      %p68 = scmp.eq.s32.totalorder %s21, 0
      %p69 = por %p67, %p68
      %s71 = sadd.s32 %s70, 1
      %p74 = scmp.eq.s32.totalorder %s15, 1
      %p75 = scmp.ne.s32.totalorder %s70, %s72
      %p76 = scmp.eq.s32.totalorder %s15, 0
      %p77 = por %p75, %p76
      %p78 = scmp.ne.s32.totalorder %s70, %s72
      %p79 = scmp.eq.s32.totalorder %s20, 1
      %p80 = por %p78, %p79
      %p81 = scmp.ne.s32.totalorder %s72, %s73
      %p82 = scmp.eq.s32.totalorder %s20, 0
      %p83 = por %p81, %p82
      %p84 = scmp.ne.s32.totalorder %s72, %s73
      %p85 = scmp.eq.s32.totalorder %s21, 1
      %p86 = por %p84, %p85
      %p88 = scmp.ne.s32.totalorder %s73, %s87
      %p89 = scmp.eq.s32.totalorder %s21, 0
      %p90 = por %p88, %p89
      %s92 = sadd.s32 %s91, 1
      %p95 = scmp.eq.s32.totalorder %s15, 1
      %p96 = scmp.ne.s32.totalorder %s91, %s93
      %p97 = scmp.eq.s32.totalorder %s15, 0
      %p98 = por %p96, %p97
      %p99 = scmp.ne.s32.totalorder %s91, %s93
      %p100 = scmp.eq.s32.totalorder %s20, 1
      %p101 = por %p99, %p100
      %p102 = scmp.ne.s32.totalorder %s93, %s94
      %p103 = scmp.eq.s32.totalorder %s20, 0
      %p104 = por %p102, %p103
      %p105 = scmp.ne.s32.totalorder %s93, %s94
      %p106 = scmp.eq.s32.totalorder %s21, 1
      %p107 = por %p105, %p106
      %p109 = scmp.ne.s32.totalorder %s94, %s108
      %p110 = scmp.eq.s32.totalorder %s21, 0
      %p111 = por %p109, %p110
      %s113 = sadd.s32 %s112, 1
      %p116 = scmp.eq.s32.totalorder %s15, 1
      %p117 = scmp.ne.s32.totalorder %s112, %s114
      %p118 = scmp.eq.s32.totalorder %s15, 0
      %p119 = por %p117, %p118
      %p120 = scmp.ne.s32.totalorder %s112, %s114
      %p121 = scmp.eq.s32.totalorder %s20, 1
      %p122 = por %p120, %p121
      %p123 = scmp.ne.s32.totalorder %s114, %s115
      %p124 = scmp.eq.s32.totalorder %s20, 0
      %p125 = por %p123, %p124
      %p126 = scmp.ne.s32.totalorder %s114, %s115
      %p127 = scmp.eq.s32.totalorder %s21, 1
      %p128 = por %p126, %p127
      %p130 = scmp.ne.s32.totalorder %s115, %s129
      %p131 = scmp.eq.s32.totalorder %s21, 0
      %p132 = por %p130, %p131
      %s134 = sadd.s32 %s133, 1
      %p137 = scmp.eq.s32.totalorder %s15, 1
      %p138 = scmp.ne.s32.totalorder %s133, %s135
      %p139 = scmp.eq.s32.totalorder %s15, 0
      %p140 = por %p138, %p139
      %p141 = scmp.ne.s32.totalorder %s133, %s135
      %p142 = scmp.eq.s32.totalorder %s20, 1
      %p143 = por %p141, %p142
      %p144 = scmp.ne.s32.totalorder %s135, %s136
      %p145 = scmp.eq.s32.totalorder %s20, 0
      %p146 = por %p144, %p145
      %p147 = scmp.ne.s32.totalorder %s135, %s136
      %p148 = scmp.eq.s32.totalorder %s21, 1
      %p149 = por %p147, %p148
      %p151 = scmp.ne.s32.totalorder %s136, %s150
      %p152 = scmp.eq.s32.totalorder %s21, 0
      %p153 = por %p151, %p152
      %s154 = ssub.s32 %s15, %s22
      %p155 = scmp.eq.s32.totalorder %s154, 0
      %s157 = sadd.s32 %s156, 1
      %s158 = scalar_select %p155, %s156, %s157
      %p161 = pneg %p155
      %p162 = scmp.eq.s32.totalorder %s15, 1
      %p163 = por %p161, %p162
      %p164 = scmp.ne.s32.totalorder %s156, %s159
      %p165 = scmp.eq.s32.totalorder %s15, 0
      %p166 = por %p164, %p165
      %p167 = scmp.ne.s32.totalorder %s156, %s159
      %p168 = scmp.eq.s32.totalorder %s20, 1
      %p169 = por %p167, %p168
      %p170 = scmp.ne.s32.totalorder %s159, %s160
      %p171 = scmp.eq.s32.totalorder %s20, 0
      %p172 = por %p170, %p171
      %p173 = scmp.ne.s32.totalorder %s159, %s160
      %p174 = scmp.eq.s32.totalorder %s21, 1
      %p175 = por %p173, %p174
      %p177 = scmp.ne.s32.totalorder %s160, %s176
      %p178 = scmp.eq.s32.totalorder %s21, 0
      %p179 = por %p177, %p178
      %p180 = scmp.le.s32.totalorder 1, %s15
      %p181 = scmp.lt.s32.totalorder %s15, 3
      %p182 = pnand %p180, %p181
      %p183 = pneg %p182
      // Predicated region
      $region9: #{tpu_custom_call.1} parent=5 // pred_check
        _
      $region10: #{tpu_custom_call.1} parent=5 // pred_check_branch
        %185 = sbr.rel (%p182) target = $region12
      $region11: #{tpu_custom_call.1} parent=5 // pred_region
        %s186 = ssub.s32 %s15, 1
        // Predicated region
        $region13: #{tpu_custom_call.1} parent=11 // pred_check
          %p187 = pneg %p62
        $region14: #{tpu_custom_call.1} parent=11 // pred_check_branch
          %189 = sbr.rel (%p187) target = $region16
        $region15: #{tpu_custom_call.1} parent=11 // pred_region
          _
        $region16: #{tpu_custom_call.1} parent=11 // pred_fallthru
          _
        // Predicated region
        $region17: #{tpu_custom_call.1} parent=11 // pred_check
          %p190 = pneg %p83
        $region18: #{tpu_custom_call.1} parent=11 // pred_check_branch
          %192 = sbr.rel (%p190) target = $region20
        $region19: #{tpu_custom_call.1} parent=11 // pred_region
          _
        $region20: #{tpu_custom_call.1} parent=11 // pred_fallthru
          _
        // Predicated region
        $region21: #{tpu_custom_call.1} parent=11 // pred_check
          %p193 = pneg %p104
        $region22: #{tpu_custom_call.1} parent=11 // pred_check_branch
          %195 = sbr.rel (%p193) target = $region24
        $region23: #{tpu_custom_call.1} parent=11 // pred_region
          _
        $region24: #{tpu_custom_call.1} parent=11 // pred_fallthru
          _
        // Predicated region
        $region25: #{tpu_custom_call.1} parent=11 // pred_check
          %p196 = pneg %p125
        $region26: #{tpu_custom_call.1} parent=11 // pred_check_branch
          %198 = sbr.rel (%p196) target = $region28
        $region27: #{tpu_custom_call.1} parent=11 // pred_region
          _
        $region28: #{tpu_custom_call.1} parent=11 // pred_fallthru
          _
        // Predicated region
        $region29: #{tpu_custom_call.1} parent=11 // pred_check
          %p199 = pneg %p146
        $region30: #{tpu_custom_call.1} parent=11 // pred_check_branch
          %201 = sbr.rel (%p199) target = $region32
        $region31: #{tpu_custom_call.1} parent=11 // pred_region
          _
        $region32: #{tpu_custom_call.1} parent=11 // pred_fallthru
          _
      $region12: #{tpu_custom_call.1} parent=5 // pred_fallthru
        _
      %p202 = scmp.lt.s32.totalorder %s15, 2
      // Predicated region
      $region33: #{tpu_custom_call.1} parent=5 // pred_check
        %p203 = pneg %p202
      $region34: #{tpu_custom_call.1} parent=5 // pred_check_branch
        %205 = sbr.rel (%p203) target = $region36
      $region35: #{tpu_custom_call.1} parent=5 // pred_region
        // Predicated region
        $region37: #{tpu_custom_call.1} parent=35 // pred_check
          %p206 = pneg %p35
        $region38: #{tpu_custom_call.1} parent=35 // pred_check_branch
          %208 = sbr.rel (%p206) target = $region40
        $region39: #{tpu_custom_call.1} parent=35 // pred_region
          %p209 = scmp.lt.s32.totalorder %s15, 1
          %s210 = scalar_select %p209, %s15, 1
          %s211 = smul.addr %s210, 2
          %s212 = smul.addr %s211, 4
          %s213 = scalar_lea.vmem %s0, %s212
        $region40: #{tpu_custom_call.1} parent=35 // pred_fallthru
          _
      $region36: #{tpu_custom_call.1} parent=5 // pred_fallthru
        _
      %p214 = scmp.le.s32.totalorder 1, %s15
      %p215 = scmp.lt.s32.totalorder %s15, 3
      %p216 = pnand %p214, %p215
      %p217 = pneg %p216
      // Predicated region
      $region41: #{tpu_custom_call.1} parent=5 // pred_check
        _
      $region42: #{tpu_custom_call.1} parent=5 // pred_check_branch
        %219 = sbr.rel (%p216) target = $region44
      $region43: #{tpu_custom_call.1} parent=5 // pred_region
        %s220 = ssub.s32 %s15, 1
        %p221 = scmp.lt.s32.totalorder %s20, 1
        %s222 = scalar_select %p221, %s20, 1
        %s223 = smul.addr %s222, 2
        %s224 = smul.addr %s223, 4
        %s225 = scalar_lea.vmem %s0, %s224
        %p226 = pneg %p41
        %p227 = pneg %p38
        %p228 = pneg %p62
        %p229 = pneg %p59
        %p230 = pneg %p83
        %p231 = pneg %p80
        %p232 = pneg %p104
        %p233 = pneg %p101
        %p234 = pneg %p125
        %p235 = pneg %p122
        %p236 = pneg %p146
        %p237 = pneg %p143
        %p238 = pneg %p172
        %p239 = pneg %p169
        %s240 = sand.u32 %s159, 1
        %s241 = scalar_lea.sflag [#allocation4], %s240
        %s242 = sand.u32 %s159, 1
        %s243 = smul.addr %s242, 16
        %s244 = scalar_lea.vmem [#allocation3], %s243
        %p245 = scmp.lt.s32.totalorder %s20, 1
        %s246 = scalar_select %p245, %s20, 1
        %s247 = smul.addr %s246, 2
        %s248 = smul.addr %s247, 4
        %s249 = scalar_lea.vmem %s0, %s248
        %250 = vst [vmem:[#allocation2] sm:$0xff] 0.0
        %251 = vst [vmem:[#allocation2 + $0x8] sm:$0xff] 0.0
        %v252 = vld [vmem:[%s249] sm:$0xff]
        %253 = vst [vmem:[#allocation2 + $0x4] sm:$0xff] %v252
        %v254 = vld [vmem:[%s1] sm:$0x3]
        %v255 = vld [vmem:[%s2] sm:$0xf]
        %v256 = vld [vmem:[%s2 + $0x4] sm:$0xf]
        %v257 = vld [vmem:[%s2 + $0x8] sm:$0xf]
        %v258 = vld [vmem:[%s2 + $0xc] sm:$0xf]
        %v259 = vld [vmem:[%s2 + $0x10] sm:$0xf]
        %v260 = vld [vmem:[%s2 + $0x14] sm:$0xf]
        %v261 = vld [vmem:[%s2 + $0x18] sm:$0xf]
        %v262 = vld [vmem:[%s2 + $0x1c] sm:$0xf]
        %v263 = vld [vmem:[%s2 + $0x20] sm:$0xf]
        %v264 = vld [vmem:[%s4] sm:$0xff]
        %v265 = vld [vmem:[%s4 + $0x8] sm:$0xff]
        %v266 = vld [vmem:[%s4 + $0x10] sm:$0xff]
        %v267 = vld [vmem:[%s4 + $0x18] sm:$0xff]
        %v268 = vld [vmem:[#allocation2] sm:$0xff]
        %v269 = vld [vmem:[#allocation2 + $0x8] sm:$0xf]
        %vm270 = vcmp.ge.s32.totalorder %v254, 1
        %v271 = vsel %vm270, 1, 0
        %v272 = vperm.slane %v271, 0
        %v273 = vperm.slane %v271, 1
        %vm274 = vcmp.eq.s32.totalorder %v272, 1
        %vm275 = vcmp.eq.s32.totalorder %v273, 1
        %278 = vst [vmem:[#allocation1] ss:$2 sm:$0xff] %v268
        %s279 = scalar_lea.vmem [#allocation1], 16
        %280 = vst [vmem:[%s279] ss:$2 sm:$0xff] %v269
        %v281 = vld.sshfl [vmem:[#allocation1] sm:$0xff pattern:$0x75316420]
        %v282 = vld.sshfl [vmem:[#allocation1 + $0x8] sm:$0xff pattern:$0x75316420]
        %v283 = vld.sshfl [vmem:[#allocation1 + $0x10] sm:$0xff pattern:$0x75316420]
        %284 = vrot.lane.b32.xlu0 %v281, 17
        %v285 = vpop.permute.xlu0 %284
        %286 = vrot.lane.b32.xlu0 %v282, 17
        %v287 = vpop.permute.xlu0 %286
        %288 = vrot.lane.b32.xlu0 %v283, 17
        %v289 = vpop.permute.xlu0 %288
        %vm290 = vcmask 138240
        %v291 = vsel %vm290, %v285, %v287
        %v292 = vsel %vm290, %v287, %v289
        %v295 = vsel %vm274, %v291, 0.0
        %v296 = vsel %vm275, %v292, 0.0
        %298 = vset.pattern.permute.xlu0 0
        %299 = vperm.xlu0 %298, %v255
        %v300 = vpop.permute.xlu0 %299
        %v302 = vmul.f32 %v295, %v300
        %v303 = vmul.f32 %v296, %v300
        %v304 = vadd.f32 %v302, 0.0
        %v305 = vadd.f32 %v303, 0.0
        %v306 = vld [vmem:[#allocation2] sm:$0xff]
        %v307 = vld [vmem:[#allocation2 + $0x8] sm:$0xf]
        %309 = vset.pattern.permute.xlu0 0
        %310 = vperm.xlu0 %309, %v256
        %v311 = vpop.permute.xlu0 %310
        %v313 = vunpack.c.l.s4 839922192
        %v314 = vunpack.c.0.s8 %v313
        %v315 = vperm.slane %v311, %v314
        %v317 = vmul.f32 %v306, %v315
        %v318 = vmul.f32 %v307, %v315
        %321 = vst [vmem:[#allocation1] ss:$2 sm:$0xff] %v317
        %s322 = scalar_lea.vmem [#allocation1], 16
        %323 = vst [vmem:[%s322] ss:$2 sm:$0xff] %v318
        %v324 = vld.sshfl [vmem:[#allocation1] sm:$0xff pattern:$0x75316420]
        %v325 = vld.sshfl [vmem:[#allocation1 + $0x8] sm:$0xff pattern:$0x75316420]
        %v326 = vld.sshfl [vmem:[#allocation1 + $0x10] sm:$0xff pattern:$0x75316420]
        %327 = vrot.lane.b32.xlu0 %v324, 16
        %v328 = vpop.permute.xlu0 %327
        %329 = vrot.lane.b32.xlu0 %v325, 16
        %v330 = vpop.permute.xlu0 %329
        %331 = vrot.lane.b32.xlu0 %v326, 16
        %v332 = vpop.permute.xlu0 %331
        %vm333 = vcmask 130048
        %v334 = vsel %vm333, %v328, %v330
        %v335 = vsel %vm333, %v330, %v332
        %v338 = vadd.f32 %v304, %v334
        %v339 = vadd.f32 %v305, %v335
        %v340 = vld [vmem:[#allocation2] sm:$0xff]
        %v341 = vld [vmem:[#allocation2 + $0x8] sm:$0xf]
        %vm342 = vcmp.lt.s32.totalorder %v254, 15
        %v343 = vsel %vm342, 1, 0
        %v344 = vperm.slane %v343, 0
        %v345 = vperm.slane %v343, 1
        %vm346 = vcmp.eq.s32.totalorder %v344, 1
        %vm347 = vcmp.eq.s32.totalorder %v345, 1
        %350 = vst [vmem:[#allocation1] ss:$2 sm:$0xff] %v340
        %s351 = scalar_lea.vmem [#allocation1], 16
        %352 = vst [vmem:[%s351] ss:$2 sm:$0xff] %v341
        %v353 = vld.sshfl [vmem:[#allocation1] sm:$0xff pattern:$0x75316420]
        %v354 = vld.sshfl [vmem:[#allocation1 + $0x8] sm:$0xff pattern:$0x75316420]
        %v355 = vld.sshfl [vmem:[#allocation1 + $0x10] sm:$0xff pattern:$0x75316420]
        %356 = vrot.lane.b32.xlu0 %v353, 15
        %v357 = vpop.permute.xlu0 %356
        %358 = vrot.lane.b32.xlu0 %v354, 15
        %v359 = vpop.permute.xlu0 %358
        %360 = vrot.lane.b32.xlu0 %v355, 15
        %v361 = vpop.permute.xlu0 %360
        %vm362 = vcmask 121856
        %v363 = vsel %vm362, %v357, %v359
        %v364 = vsel %vm362, %v359, %v361
        %v367 = vsel %vm346, %v363, 0.0
        %v368 = vsel %vm347, %v364, 0.0
        %370 = vset.pattern.permute.xlu0 0
        %371 = vperm.xlu0 %370, %v257
        %v372 = vpop.permute.xlu0 %371
        %v374 = vmul.f32 %v367, %v372
        %v375 = vmul.f32 %v368, %v372
        %v376 = vadd.f32 %v338, %v374
        %v377 = vadd.f32 %v339, %v375
        %v378 = vld [vmem:[#allocation2] sm:$0xff]
        %v379 = vld [vmem:[#allocation2 + $0x8] sm:$0xf]
        %382 = vst [vmem:[#allocation1] ss:$2 sm:$0xff] %v378
        %s383 = scalar_lea.vmem [#allocation1], 16
        %384 = vst [vmem:[%s383] ss:$2 sm:$0xff] %v379
        %v385 = vld.sshfl [vmem:[#allocation1] sm:$0xff pattern:$0x75316420]
        %v386 = vld.sshfl [vmem:[#allocation1 + $0x8] sm:$0xff pattern:$0x75316420]
        %v387 = vld.sshfl [vmem:[#allocation1 + $0x10] sm:$0xff pattern:$0x75316420]
        %388 = vrot.lane.b32.xlu0 %v385, 1
        %v389 = vpop.permute.xlu0 %388
        %390 = vrot.lane.b32.xlu0 %v386, 1
        %v391 = vpop.permute.xlu0 %390
        %392 = vrot.lane.b32.xlu0 %v387, 1
        %v393 = vpop.permute.xlu0 %392
        %vm394 = vcmask 7168
        %v395 = vsel %vm394, %v389, %v391
        %v396 = vsel %vm394, %v391, %v393
        %v399 = vsel %vm274, %v395, 0.0
        %v400 = vsel %vm275, %v396, 0.0
        %402 = vset.pattern.permute.xlu0 0
        %403 = vperm.xlu0 %402, %v258
        %v404 = vpop.permute.xlu0 %403
        %v406 = vmul.f32 %v399, %v404
        %v407 = vmul.f32 %v400, %v404
        %v408 = vadd.f32 %v376, %v406
        %v409 = vadd.f32 %v377, %v407
        %v410 = vld [vmem:[#allocation2 + $0x4] sm:$0xff]
        %412 = vset.pattern.permute.xlu0 0
        %413 = vperm.xlu0 %412, %v259
        %v414 = vpop.permute.xlu0 %413
        %v416 = vunpack.c.l.s4 839922192
        %v417 = vunpack.c.0.s8 %v416
        %v418 = vperm.slane %v414, %v417
        %v420 = vmul.f32 %v410, %v418
        %422 = vst [vmem:[#allocation1] ss:$2 sm:$0xff] %v420
        %v423 = vld.sshfl [vmem:[#allocation1] sm:$0xff pattern:$0x75316420]
        %v424 = vld.sshfl [vmem:[#allocation1 + $0x8] sm:$0xff pattern:$0x75316420]
        %v427 = vadd.f32 %v408, %v423
        %v428 = vadd.f32 %v409, %v424
        %v429 = vld [vmem:[#allocation2 + $0x4] sm:$0xff]
        %v430 = vld [vmem:[#allocation2 + $0xc] sm:$0xf]
        %433 = vst [vmem:[#allocation1] ss:$2 sm:$0xff] %v429
        %s434 = scalar_lea.vmem [#allocation1], 16
        %435 = vst [vmem:[%s434] ss:$2 sm:$0xff] %v430
        %v436 = vld.sshfl [vmem:[#allocation1] sm:$0xff pattern:$0x75316420]
        %v437 = vld.sshfl [vmem:[#allocation1 + $0x8] sm:$0xff pattern:$0x75316420]
        %v438 = vld.sshfl [vmem:[#allocation1 + $0x10] sm:$0xff pattern:$0x75316420]
        %439 = vrot.lane.b32.xlu0 %v436, 127
        %v440 = vpop.permute.xlu0 %439
        %441 = vrot.lane.b32.xlu0 %v437, 127
        %v442 = vpop.permute.xlu0 %441
        %443 = vrot.lane.b32.xlu0 %v438, 127
        %v444 = vpop.permute.xlu0 %443
        %vm445 = vcmask 1039360
        %v446 = vsel %vm445, %v440, %v442
        %v447 = vsel %vm445, %v442, %v444
        %v450 = vsel %vm346, %v446, 0.0
        %v451 = vsel %vm347, %v447, 0.0
        %453 = vset.pattern.permute.xlu0 0
        %454 = vperm.xlu0 %453, %v260
        %v455 = vpop.permute.xlu0 %454
        %v457 = vmul.f32 %v450, %v455
        %v458 = vmul.f32 %v451, %v455
        %v459 = vadd.f32 %v427, %v457
        %v460 = vadd.f32 %v428, %v458
        %v461 = vld [vmem:[#allocation2 + $0x4] sm:$0xff]
        %v462 = vld [vmem:[#allocation2 + $0xc] sm:$0xf]
        %465 = vst [vmem:[#allocation1] ss:$2 sm:$0xff] %v461
        %s466 = scalar_lea.vmem [#allocation1], 16
        %467 = vst [vmem:[%s466] ss:$2 sm:$0xff] %v462
        %v468 = vld.sshfl [vmem:[#allocation1] sm:$0xff pattern:$0x75316420]
        %v469 = vld.sshfl [vmem:[#allocation1 + $0x8] sm:$0xff pattern:$0x75316420]
        %v470 = vld.sshfl [vmem:[#allocation1 + $0x10] sm:$0xff pattern:$0x75316420]
        %471 = vrot.lane.b32.xlu0 %v468, 113
        %v472 = vpop.permute.xlu0 %471
        %473 = vrot.lane.b32.xlu0 %v469, 113
        %v474 = vpop.permute.xlu0 %473
        %475 = vrot.lane.b32.xlu0 %v470, 113
        %v476 = vpop.permute.xlu0 %475
        %vm477 = vcmask 924672
        %v478 = vsel %vm477, %v472, %v474
        %v479 = vsel %vm477, %v474, %v476
        %v482 = vsel %vm274, %v478, 0.0
        %v483 = vsel %vm275, %v479, 0.0
        %485 = vset.pattern.permute.xlu0 0
        %486 = vperm.xlu0 %485, %v261
        %v487 = vpop.permute.xlu0 %486
        %v489 = vmul.f32 %v482, %v487
        %v490 = vmul.f32 %v483, %v487
        %v491 = vadd.f32 %v459, %v489
        %v492 = vadd.f32 %v460, %v490
        %v493 = vld [vmem:[#allocation2 + $0x4] sm:$0xff]
        %v494 = vld [vmem:[#allocation2 + $0xc] sm:$0xf]
        %496 = vset.pattern.permute.xlu0 0
        %497 = vperm.xlu0 %496, %v262
        %v498 = vpop.permute.xlu0 %497
        %v500 = vunpack.c.l.s4 839922192
        %v501 = vunpack.c.0.s8 %v500
        %v502 = vperm.slane %v498, %v501
        %v504 = vmul.f32 %v493, %v502
        %v505 = vmul.f32 %v494, %v502
        %508 = vst [vmem:[#allocation1] ss:$2 sm:$0xff] %v504
        %s509 = scalar_lea.vmem [#allocation1], 16
        %510 = vst [vmem:[%s509] ss:$2 sm:$0xff] %v505
        %v511 = vld.sshfl [vmem:[#allocation1] sm:$0xff pattern:$0x75316420]
        %v512 = vld.sshfl [vmem:[#allocation1 + $0x8] sm:$0xff pattern:$0x75316420]
        %v513 = vld.sshfl [vmem:[#allocation1 + $0x10] sm:$0xff pattern:$0x75316420]
        %514 = vrot.lane.b32.xlu0 %v511, 112
        %v515 = vpop.permute.xlu0 %514
        %516 = vrot.lane.b32.xlu0 %v512, 112
        %v517 = vpop.permute.xlu0 %516
        %518 = vrot.lane.b32.xlu0 %v513, 112
        %v519 = vpop.permute.xlu0 %518
        %vm520 = vcmask 916480
        %v521 = vsel %vm520, %v515, %v517
        %v522 = vsel %vm520, %v517, %v519
        %v525 = vadd.f32 %v491, %v521
        %v526 = vadd.f32 %v492, %v522
        %v527 = vld [vmem:[#allocation2 + $0x4] sm:$0xff]
        %v528 = vld [vmem:[#allocation2 + $0xc] sm:$0xf]
        %531 = vst [vmem:[#allocation1] ss:$2 sm:$0xff] %v527
        %s532 = scalar_lea.vmem [#allocation1], 16
        %533 = vst [vmem:[%s532] ss:$2 sm:$0xff] %v528
        %v534 = vld.sshfl [vmem:[#allocation1] sm:$0xff pattern:$0x75316420]
        %v535 = vld.sshfl [vmem:[#allocation1 + $0x8] sm:$0xff pattern:$0x75316420]
        %v536 = vld.sshfl [vmem:[#allocation1 + $0x10] sm:$0xff pattern:$0x75316420]
        %537 = vrot.lane.b32.xlu0 %v534, 111
        %v538 = vpop.permute.xlu0 %537
        %539 = vrot.lane.b32.xlu0 %v535, 111
        %v540 = vpop.permute.xlu0 %539
        %541 = vrot.lane.b32.xlu0 %v536, 111
        %v542 = vpop.permute.xlu0 %541
        %vm543 = vcmask 908288
        %v544 = vsel %vm543, %v538, %v540
        %v545 = vsel %vm543, %v540, %v542
        %v548 = vsel %vm346, %v544, 0.0
        %v549 = vsel %vm347, %v545, 0.0
        %551 = vset.pattern.permute.xlu0 0
        %552 = vperm.xlu0 %551, %v263
        %v553 = vpop.permute.xlu0 %552
        %v555 = vmul.f32 %v548, %v553
        %v556 = vmul.f32 %v549, %v553
        %v557 = vadd.f32 %v525, %v555
        %v558 = vadd.f32 %v526, %v556
        %v559 = vld [vmem:[%s3] sm:$0xf]
        %561 = vset.pattern.permute.xlu0 0
        %562 = vperm.xlu0 %561, %v559
        %v563 = vpop.permute.xlu0 %562
        %v565 = vadd.f32 %v557, %v563
        %v566 = vadd.f32 %v558, %v563
        %v567 = vmax.f32 %v565, 0.0
        %v568 = vmax.f32 %v566, 0.0
        %v569 = vperm.slane %v567, 0
        %v570 = vperm.slane %v568, 0
        %572 = vset.pattern.permute.xlu0 0
        %573 = vperm.xlu0 %572, %v264
        %v574 = vpop.permute.xlu0 %573
        %v576 = vmul.f32 %v569, %v574
        %v577 = vmul.f32 %v570, %v574
        %v578 = vadd.f32 %v576, 0.0
        %v579 = vadd.f32 %v577, 0.0
        %v580 = vperm.slane %v567, 1
        %v581 = vperm.slane %v568, 1
        %583 = vset.pattern.permute.xlu0 0
        %584 = vperm.xlu0 %583, %v265
        %v585 = vpop.permute.xlu0 %584
        %v587 = vmul.f32 %v580, %v585
        %v588 = vmul.f32 %v581, %v585
        %v589 = vadd.f32 %v578, %v587
        %v590 = vadd.f32 %v579, %v588
        %v591 = vperm.slane %v567, 2
        %v592 = vperm.slane %v568, 2
        %594 = vset.pattern.permute.xlu0 0
        %595 = vperm.xlu0 %594, %v266
        %v596 = vpop.permute.xlu0 %595
        %v598 = vmul.f32 %v591, %v596
        %v599 = vmul.f32 %v592, %v596
        %v600 = vadd.f32 %v589, %v598
        %v601 = vadd.f32 %v590, %v599
        %v602 = vperm.slane %v567, 3
        %v603 = vperm.slane %v568, 3
        %605 = vset.pattern.permute.xlu0 0
        %606 = vperm.xlu0 %605, %v267
        %v607 = vpop.permute.xlu0 %606
        %v609 = vmul.f32 %v602, %v607
        %v610 = vmul.f32 %v603, %v607
        %v611 = vadd.f32 %v600, %v609
        %v612 = vadd.f32 %v601, %v610
        %v613 = vld [vmem:[%s5] sm:$0xff]
        %615 = vset.pattern.permute.xlu0 0
        %616 = vperm.xlu0 %615, %v613
        %v617 = vpop.permute.xlu0 %616
        %v619 = vadd.f32 %v611, %v617
        %v620 = vadd.f32 %v612, %v617
        %v621 = vmax.f32 %v619, 0.0
        %v622 = vmax.f32 %v620, 0.0
        %623 = vst [vmem:[%s244] sm:$0xff] %v621
        %624 = vst [vmem:[%s244 + $0x8] sm:$0xff] %v622
        %s625 = sand.u32 %s159, 1
        %s626 = scalar_lea.sflag [#allocation4], %s625
        %s627 = sand.u32 %s159, 1
        %s628 = smul.addr %s627, 16
        %s629 = scalar_lea.vmem [#allocation3], %s628
        // Predicated region
        $region45: #{tpu_custom_call.1} parent=43 // pred_check
          %p630 = pneg %p169
        $region46: #{tpu_custom_call.1} parent=43 // pred_check_branch
          %632 = sbr.rel (%p630) target = $region48
        $region47: #{tpu_custom_call.1} parent=43 // pred_region
          %634 = vsyncadd %s626, 0
          %s635 = smul.addr %s20, 2
          %s636 = smul.addr %s635, 8
          %s637 = scalar_lea.hbm %s6, %s636
          %s639 = sshll.u32 %s629, 4
          %s640 = int_to_ptr.vmem [resolvable:$true] %s639
          %s641 = sshll.u32 %s637, 4
          %s642 = int_to_ptr.hbm [resolvable:$true] %s641
          %644 = dma.vmem_to_hbm [thread:$0]  %s640, 256, %s642, %s626
        $region48: #{tpu_custom_call.1} parent=43 // pred_fallthru
          _
      $region44: #{tpu_custom_call.1} parent=5 // pred_fallthru
        _
      %p645 = scmp.le.s32.totalorder 2, %s15
      // Predicated region
      $region49: #{tpu_custom_call.1} parent=5 // pred_check
        %p646 = pneg %p645
      $region50: #{tpu_custom_call.1} parent=5 // pred_check_branch
        %648 = sbr.rel (%p646) target = $region52
      $region51: #{tpu_custom_call.1} parent=5 // pred_region
        %s649 = ssub.s32 %s15, 2
        // Predicated region
        $region53: #{tpu_custom_call.1} parent=51 // pred_check
          %p650 = pneg %p175
        $region54: #{tpu_custom_call.1} parent=51 // pred_check_branch
          %652 = sbr.rel (%p650) target = $region56
        $region55: #{tpu_custom_call.1} parent=51 // pred_region
          %s653 = sand.u32 %s160, 1
          %s654 = scalar_lea.sflag [#allocation4], %s653
          %s655 = sand.u32 %s160, 1
          %s656 = smul.addr %s655, 16
          %s657 = scalar_lea.vmem [#allocation3], %s656
          %659 = dma.done %s654, 256
        $region56: #{tpu_custom_call.1} parent=51 // pred_fallthru
          _
      $region52: #{tpu_custom_call.1} parent=5 // pred_fallthru
        _
    $region6: #{tpu_custom_call.1} parent=1 // loop_footer
      %s19 = sadd.s32 1, %s15
    $region7: #{tpu_custom_call.1} parent=1 // loop_footer_branch
      %14 = sbr.rel target = $region3
    $region8: #{tpu_custom_call.1} parent=1 // loop_exit
      _
    %660 = vsyncpa [#allocation4], 1
    %s661 = scalar_lea.sflag [#allocation4], 1
    %662 = vsyncpa %s661, 1

</llo_original>
